<compile_context>
chip_gen: v5e
topology: v5e:2x2
jax: 0.10.0
libtpu: 0.0.40
codegen_flags: <defaults>
</compile_context>

<pallas_src>
import functools
import math

import jax
import jax.numpy as jnp
from jax.experimental import pallas as pl
from jax.experimental.pallas import tpu as pltpu

_LANES = 128              # vreg lane width; last dim of the 2-D slab
_DEFAULT_ROW_TILE = 4096  # 4096 x 128 x 4 B = 2 MiB per f32 block


def _gelu_kernel(x_ref, o_ref, *, approximate: bool):
    x = x_ref[...].astype(jnp.float32)
    if approximate:
        # tanh GELU: transcendental goes to the EUP slot (v7x VALU relief).
        # TODO(synk): only enable if consumers tolerate approximate='tanh' numerics.
        c = jnp.float32(math.sqrt(2.0 / math.pi))
        y = 0.5 * x * (1.0 + jnp.tanh(c * (x + jnp.float32(0.044715) * x * x * x)))
    else:
        # Exact GELU: 0.5 * x * (1 + erf(x / sqrt(2))) — matches F.gelu default.
        inv_sqrt2 = jnp.float32(1.0 / math.sqrt(2.0))
        y = 0.5 * x * (1.0 + jax.lax.erf(x * inv_sqrt2))
    o_ref[...] = y.astype(o_ref.dtype)


def wrapped_activation(
    x: jax.Array,
    *,
    row_tile: int = _DEFAULT_ROW_TILE,
    approximate: bool = False,
) -> jax.Array:
    """Applies the wrapped activation (GELU) elementwise via a Pallas TPU kernel."""
    orig_shape = x.shape
    orig_dtype = x.dtype
    total = x.size
    itemsize = jnp.dtype(orig_dtype).itemsize

    # Minimal pad granularity: one packed (sublane, 128) tile for this dtype
    # (8 rows for f32, 16 for bf16, 32 for int8) — NOT a multiple of row_tile.
    sublane_granule = 8 * max(1, 4 // itemsize)
    min_chunk = sublane_granule * _LANES

    x_flat = jnp.ravel(x)
    padded = pl.cdiv(total, min_chunk) * min_chunk
    needs_pad = padded != total
    if needs_pad:
        # GELU(0) == 0, and the tail is sliced off below anyway.
        x_flat = jnp.pad(x_flat, (0, padded - total))
    x2d = x_flat.reshape(padded // _LANES, _LANES)
    n_rows = x2d.shape[0]

    # Cap the row tile at the array size (small inputs → one full block); keep
    # it a multiple of the sublane granule otherwise.  Edge (partial) leading
    # block is handled by Pallas masked writeback via the cdiv grid.
    rt = min(row_tile, n_rows)
    if rt < n_rows:
        rt = max(sublane_granule, (rt // sublane_granule) * sublane_granule)
    grid = (pl.cdiv(n_rows, rt),)

    cost = pl.CostEstimate(
        flops=8 * total,
        transcendentals=total,
        bytes_accessed=2 * total * itemsize,
    )

    out2d = pl.pallas_call(
        functools.partial(_gelu_kernel, approximate=approximate),
        out_shape=jax.ShapeDtypeStruct(x2d.shape, orig_dtype),
        grid_spec=pltpu.PrefetchScalarGridSpec(
            num_scalar_prefetch=0,
            grid=grid,
            in_specs=[pl.BlockSpec((rt, _LANES), lambda i: (i, 0))],
            out_specs=pl.BlockSpec((rt, _LANES), lambda i: (i, 0)),
        ),
        compiler_params=pltpu.CompilerParams(
            dimension_semantics=("parallel",),
        ),
        cost_estimate=cost,
    )(x2d)

    out_flat = out2d.reshape(padded)
    if needs_pad:
        out_flat = out_flat[:total]
    return out_flat.reshape(orig_shape)


def _gelu_ref(x):
    xf = x.astype(jnp.float32)
    return (0.5 * xf * (1.0 + jax.lax.erf(xf / jnp.sqrt(jnp.float32(2.0))))).astype(x.dtype)


if __name__ == "__main__":
    key = jax.random.PRNGKey(0)

    # Small NCHW activation tensor, consistent with the module's usage inside
    # a conv net: batch=2, channels=4, spatial=16x16.  2048 elems → no pad,
    # single full block.
    x = jax.random.normal(key, (2, 4, 16, 16), dtype=jnp.float32)
    y = jax.block_until_ready(wrapped_activation(x))
    y_ref = _gelu_ref(x)
    assert y.shape == x.shape and y.dtype == x.dtype
    assert jnp.allclose(y, y_ref, atol=1e-5, rtol=1e-5)

    # Second small check exercising the multi-block grid + partial edge-block
    # path (force a small row_tile so the grid has several steps).
    k2 = jax.random.PRNGKey(1)
    x2 = jax.random.normal(k2, (2, 4, 30, 17), dtype=jnp.float32)  # non-divisible size
    y2 = jax.block_until_ready(wrapped_activation(x2, row_tile=8))
    assert jnp.allclose(y2, _gelu_ref(x2), atol=1e-5, rtol=1e-5)

    print("KERNEL_OK")
</pallas_src>

<mosaic_0001>
module attributes {stable_mosaic.version = 11 : i64} {
  func.func @_gelu_kernel(%arg0: i32, %arg1: memref<16x128xf32, #tpu.memory_space<vmem>>, %arg2: memref<16x128xf32, #tpu.memory_space<vmem>>) attributes {dimension_semantics = [#tpu.dimension_semantics<parallel>], iteration_bounds = array<i64: 1>, scalar_prefetch = 0 : i64, scratch_operands = 0 : i64, tpu.core_type = #tpu.core_type<tc>, window_params = [{transform_indices = @transform_0, window_bounds = array<i64: 16, 128>}, {transform_indices = @transform_1, window_bounds = array<i64: 16, 128>}]} {
    %c0 = arith.constant 0 : index
    %c0_0 = arith.constant 0 : index
    %0 = vector.load %arg1[%c0, %c0_0] : memref<16x128xf32, #tpu.memory_space<vmem>>, vector<16x128xf32>
    %cst = arith.constant 5.000000e-01 : f32
    %1 = vector.broadcast %cst : f32 to vector<16x128xf32>
    %2 = arith.mulf %1, %0 : vector<16x128xf32>
    %cst_1 = arith.constant 0.707106769 : f32
    %3 = vector.broadcast %cst_1 : f32 to vector<16x128xf32>
    %4 = arith.mulf %0, %3 : vector<16x128xf32>
    %5 = math.erf %4 : vector<16x128xf32>
    %cst_2 = arith.constant 1.000000e+00 : f32
    %6 = vector.broadcast %cst_2 : f32 to vector<16x128xf32>
    %7 = arith.addf %6, %5 : vector<16x128xf32>
    %8 = arith.mulf %2, %7 : vector<16x128xf32>
    %c0_3 = arith.constant 0 : index
    %c0_4 = arith.constant 0 : index
    %9 = vector.load %arg2[%c0_3, %c0_4] : memref<16x128xf32, #tpu.memory_space<vmem>>, vector<16x128xf32>
    tpu.vector_store %arg2[%c0_3, %c0_4], %8 {strides = array<i32>} : memref<16x128xf32, #tpu.memory_space<vmem>>, vector<16x128xf32>,
    return
  }
  func.func @transform_0(%arg0: i32) -> (i32, i32) {
    %c0_i32 = arith.constant 0 : i32
    %c0_i32_0 = arith.constant 0 : i32
    return %arg0, %c0_i32 : i32, i32
  }
  func.func @transform_1(%arg0: i32) -> (i32, i32) {
    %c0_i32 = arith.constant 0 : i32
    %c0_i32_0 = arith.constant 0 : i32
    return %arg0, %c0_i32 : i32, i32
  }
}

</mosaic_0001>

<llo_original>
// kernel: tpu_custom_call.1
$region0: #{tpu_custom_call.1}
  #allocation0 [shape = 'u32[]', space=smem, size = 0x4, offset = 0x4, fixed_abs, tag = 'smem constant byte address 0x4 - core index']
  #allocation1 [shape = 'u32[72,128]{1,0:T(1,128)}', space=vmem, size = 0x9000, scoped, tag = 'internal scratch']
  %s0 = inlined_call_operand.hbm [shape: f32[16,128], index: 0, kind: input, shape index: {}]
  %s1 = inlined_call_operand.hbm [shape: f32[16,128], index: 1, kind: output, shape index: {}]
  %s2 = sld [smem:[#allocation0]]
  $region18: #{tpu_custom_call.1} parent=0
    _
  %s4 = ssub.s32 1, %s2
  %s5 = scalar_select 0, %s4, %s2
  $region1: #{tpu_custom_call.1} parent=0
    #allocation2 [shape = 'u8[8192]{0}', space=vmem, size = 0x2000, scoped, tag = 'input window, operand 0, single buffered']
    #allocation3 [shape = 's32[1]{0}', space=sflag, size = 0x4, scoped, tag = 'scoped memory for tpu_custom_call.1']
    #allocation4 [shape = 's32[1]{0}', space=sflag, size = 0x4, scoped, tag = 'scoped memory for tpu_custom_call.1']
    #allocation5 [shape = 'u8[8192]{0}', space=vmem, size = 0x2000, scoped, tag = 'output window, operand 0, single buffered']
    %6 = vsyncpa [#allocation3], 0
    %7 = vsyncpa [#allocation4], 0
    // Predicated region
    $region2: #{tpu_custom_call.1} parent=1 // pred_check
      _
    $region3: #{tpu_custom_call.1} parent=1 // pred_check_branch
      %9 = sbr.rel (0) target = $region5
    $region4: #{tpu_custom_call.1} parent=1 // pred_region
      %11 = vsyncadd [#allocation3], 0
      %s12 = sshll.u32 %s0, 4
      %s13 = int_to_ptr.hbm [resolvable:$true] %s12
      %s14 = sshll.u32 [#allocation2], 4
      %s15 = int_to_ptr.vmem [resolvable:$true] %s14
      %20 = dma.hbm_to_vmem [thread:$0]  %s13, 256, %s15, [#allocation3], 128, 128, 8
    $region5: #{tpu_custom_call.1} parent=1 // pred_fallthru
      _
    // Predicated region
    $region6: #{tpu_custom_call.1} parent=1 // pred_check
      _
    $region7: #{tpu_custom_call.1} parent=1 // pred_check_branch
      %22 = sbr.rel (0) target = $region9
    $region8: #{tpu_custom_call.1} parent=1 // pred_region
      %24 = dma.done [#allocation3], 256
    $region9: #{tpu_custom_call.1} parent=1 // pred_fallthru
      _
    %v25 = vld [vmem:[#allocation2] sm:$0xff]
    %v26 = vld [vmem:[#allocation2 + $0x8] sm:$0xff]
    %v27 = vmul.f32 %v25, 0.5
    %v28 = vmul.f32 %v26, 0.5
    %v29 = vmul.f32 %v25, 0.70710677
    %v30 = vmul.f32 %v26, 0.70710677
    %v31 = vmul.f32 %v29, %v29
    %v32 = vmin.f32 16.0, %v31
    %v33 = vmul.f32 %v32, 2.1237322e-06
    %v34 = vadd.f32 %v33, 0.00028619796
    %v35 = vmul.f32 %v32, %v34
    %v36 = vadd.f32 %v35, 0.0036580483
    %v37 = vmul.f32 %v32, %v36
    %v38 = vadd.f32 %v37, 0.05243302
    %v39 = vmul.f32 %v32, %v38
    %v40 = vadd.f32 %v39, 0.18741608
    %v41 = vmul.f32 %v32, %v40
    %v42 = vadd.f32 %v41, 1.1283791
    %v43 = vmul.f32 %v29, %v42
    %v44 = vmul.f32 %v32, 3.8918573e-05
    %v45 = vadd.f32 %v44, 0.001143296
    %v46 = vmul.f32 %v32, %v45
    %v47 = vadd.f32 %v46, 0.014752088
    %v48 = vmul.f32 %v32, %v47
    %v49 = vadd.f32 %v48, 0.112945676
    %v50 = vmul.f32 %v32, %v49
    %v51 = vadd.f32 %v50, 0.4994258
    %v52 = vmul.f32 %v32, %v51
    %v53 = vadd.f32 %v52, 1.0
    %v54 = vrcp.pop %v53
    %v55 = vmul.f32 %v53, %v54
    %v56 = vsub.f32 1.0, %v55
    %v57 = vmul.f32 %v54, %v56
    %v58 = vadd.f32 %v54, %v57
    %vm59 = vweird.f32 %v53
    %vm60 = vweird.f32 %v54
    %vm61 = vmor %vm59, %vm60
    %v62 = vsel %vm61, %v54, %v58
    %v63 = vand.u32 2147483647, %v53
    %vm64 = vcmp.eq.f32.partialorder %v63, 8.507059e+37
    %v65 = vand.u32 %v53, 2147483648
    %v66 = vor.u32 1.1754944e-38, %v65
    %v67 = vsel %vm64, %v66, %v62
    %v68 = vmul.f32 %v43, %v67
    %v69 = vmin.f32 %v68, 1.0
    %v70 = vmax.f32 %v69, -1.0
    %v71 = vmul.f32 %v30, %v30
    %v72 = vmin.f32 16.0, %v71
    %v73 = vmul.f32 %v72, 2.1237322e-06
    %v74 = vadd.f32 %v73, 0.00028619796
    %v75 = vmul.f32 %v72, %v74
    %v76 = vadd.f32 %v75, 0.0036580483
    %v77 = vmul.f32 %v72, %v76
    %v78 = vadd.f32 %v77, 0.05243302
    %v79 = vmul.f32 %v72, %v78
    %v80 = vadd.f32 %v79, 0.18741608
    %v81 = vmul.f32 %v72, %v80
    %v82 = vadd.f32 %v81, 1.1283791
    %v83 = vmul.f32 %v30, %v82
    %v84 = vmul.f32 %v72, 3.8918573e-05
    %v85 = vadd.f32 %v84, 0.001143296
    %v86 = vmul.f32 %v72, %v85
    %v87 = vadd.f32 %v86, 0.014752088
    %v88 = vmul.f32 %v72, %v87
    %v89 = vadd.f32 %v88, 0.112945676
    %v90 = vmul.f32 %v72, %v89
    %v91 = vadd.f32 %v90, 0.4994258
    %v92 = vmul.f32 %v72, %v91
    %v93 = vadd.f32 %v92, 1.0
    %v94 = vrcp.pop %v93
    %v95 = vmul.f32 %v93, %v94
    %v96 = vsub.f32 1.0, %v95
    %v97 = vmul.f32 %v94, %v96
    %v98 = vadd.f32 %v94, %v97
    %vm99 = vweird.f32 %v93
    %vm100 = vweird.f32 %v94
    %vm101 = vmor %vm99, %vm100
    %v102 = vsel %vm101, %v94, %v98
    %v103 = vand.u32 2147483647, %v93
    %vm104 = vcmp.eq.f32.partialorder %v103, 8.507059e+37
    %v105 = vand.u32 %v93, 2147483648
    %v106 = vor.u32 1.1754944e-38, %v105
    %v107 = vsel %vm104, %v106, %v102
    %v108 = vmul.f32 %v83, %v107
    %v109 = vmin.f32 %v108, 1.0
    %v110 = vmax.f32 %v109, -1.0
    %v111 = vadd.f32 %v70, 1.0
    %v112 = vadd.f32 %v110, 1.0
    %v113 = vmul.f32 %v27, %v111
    %v114 = vmul.f32 %v28, %v112
    %115 = vst [vmem:[#allocation5] sm:$0xff] %v113
    %116 = vst [vmem:[#allocation5 + $0x8] sm:$0xff] %v114
    // Predicated region
    $region10: #{tpu_custom_call.1} parent=1 // pred_check
      _
    $region11: #{tpu_custom_call.1} parent=1 // pred_check_branch
      %118 = sbr.rel (0) target = $region13
    $region12: #{tpu_custom_call.1} parent=1 // pred_region
      %120 = vsyncadd [#allocation4], 0
      %s121 = sshll.u32 [#allocation5], 4
      %s122 = int_to_ptr.vmem [resolvable:$true] %s121
      %s123 = sshll.u32 %s1, 4
      %s124 = int_to_ptr.hbm [resolvable:$true] %s123
      %129 = dma.vmem_to_hbm [thread:$0]  %s122, 256, %s124, [#allocation4], 128, 128, 8
    $region13: #{tpu_custom_call.1} parent=1 // pred_fallthru
      _
    // Predicated region
    $region14: #{tpu_custom_call.1} parent=1 // pred_check
      _
    $region15: #{tpu_custom_call.1} parent=1 // pred_check_branch
      %131 = sbr.rel (0) target = $region17
    $region16: #{tpu_custom_call.1} parent=1 // pred_region
      %133 = dma.done [#allocation4], 256
    $region17: #{tpu_custom_call.1} parent=1 // pred_fallthru
      _
    %134 = vsyncpa [#allocation3], 1
    %135 = vsyncpa [#allocation4], 1

</llo_original>
